<compile_context>
chip_gen: v7x
topology: tpu7x:2x2x1
jax: 0.10.0
libtpu: 0.0.40
codegen_flags: <defaults>
</compile_context>

<pallas_src>
import functools

import jax
import jax.numpy as jnp
from jax.experimental import pallas as pl
from jax.experimental.pallas import tpu as pltpu


def _round_up(x, m):
    return ((x + m - 1) // m) * m


def _pick_tile_b(b_pad):
    """Largest of {1024, 512, 256, 128} dividing b_pad while leaving >= 2 grid
    steps (keeps both v7x TensorCores fed); else split once into 8-row-aligned
    halves; else a single full-batch tile."""
    for t in (1024, 512, 256, 128):
        if b_pad % t == 0 and b_pad // t >= 2:
            return t
    half = b_pad // 2
    if b_pad % 2 == 0 and half >= 8 and half % 8 == 0:
        return half
    return b_pad


# --------------------------------------------------------------------------- #
# Kernel
# --------------------------------------------------------------------------- #
def make_actor_kernel(num_layers):
    """One grid step = full Actor forward for a (tile_b, *) batch tile."""

    def kernel(x_ref, mask_ref, *refs):
        out_ref = refs[-1]
        wb = refs[:-1]  # [W1, b1, W2, b2, ..., Wn, bn]

        # ---- base model: MLP hot path (bf16 MXU matmuls, f32 accumulate) ----
        h = x_ref[...].astype(jnp.bfloat16)
        logits = None
        for i in range(num_layers):
            z = jnp.dot(h, wb[2 * i][...], preferred_element_type=jnp.float32)
            z = z + wb[2 * i + 1][...]          # f32 bias, broadcast over rows
            if i < num_layers - 1:
                h = jnp.maximum(z, 0.0).astype(jnp.bfloat16)
            else:
                logits = z                       # f32 (tile_b, A)

        # ---- softmax head (exact divide on the narrow column) ----
        m = jnp.max(logits, axis=-1, keepdims=True)
        e = jnp.exp(logits - m)
        x = e * (1.0 / jnp.sum(e, axis=-1, keepdims=True))   # sum(x) == 1

        # ---- Actor masking arithmetic (f32 epilogue, exact divides) ----
        mask = mask_ref[...].astype(jnp.float32)
        s = jnp.sum(mask, axis=-1, keepdims=True)
        inv_s = 1.0 / s
        t = jnp.sum(x * mask, axis=-1, keepdims=True)         # mass on legal
        l = (1.0 - t) * inv_s                                  # sum(x) == 1
        xm = (x + l) * mask
        # Categorical(probs=xm) normalizes internally; sum(xm) == t + l*s
        # analytically, so the exact divide keeps sum(probs) == 1 to f32
        # rounding without another full-tile reduction.
        denom = t + l * s
        out_ref[...] = (xm * (1.0 / denom)).astype(out_ref.dtype)

    return kernel


# --------------------------------------------------------------------------- #
# Parameter preparation (bf16 weights for the MXU, f32 biases, done once)
# --------------------------------------------------------------------------- #
def prepare_actor_params(params):
    """params = [W1, b1, ..., Wn, bn] -> tuple (W1 bf16, b1 f32 (1,H), ...)."""
    prepped = []
    for i in range(len(params) // 2):
        w = jnp.asarray(params[2 * i], jnp.bfloat16)
        b = jnp.asarray(params[2 * i + 1], jnp.float32).reshape(1, -1)
        prepped += [w, b]
    return tuple(prepped)


# --------------------------------------------------------------------------- #
# Forward wrapper
# --------------------------------------------------------------------------- #
@functools.partial(jax.jit, static_argnames=("tile_b",))
def actor_forward(states, action_mask, prepped_params, tile_b=None):
    B, state_dim = states.shape
    A = action_mask.shape[1]
    num_layers = len(prepped_params) // 2

    # Batch padding: multiple of 128 for large batches (nice 128..1024-row
    # tiles), multiple of 8 for small ones (<=7 dummy rows, no lane-dim pad).
    b_pad = _round_up(B, 128) if B >= 128 else _round_up(B, 8)
    if tile_b is None:
        tile_b = _pick_tile_b(b_pad)
    assert b_pad % tile_b == 0, (b_pad, tile_b)

    if b_pad != B:
        pad = b_pad - B
        states = jnp.concatenate(
            [states, jnp.zeros((pad, state_dim), states.dtype)], axis=0
        )
        # Dummy rows get a fully-legal mask to avoid 0/0; they are sliced off.
        action_mask = jnp.concatenate(
            [action_mask, jnp.ones((pad, A), action_mask.dtype)], axis=0
        )

    grid = (b_pad // tile_b,)
    in_specs = [
        pl.BlockSpec((tile_b, state_dim), lambda i: (i, 0)),
        pl.BlockSpec((tile_b, A), lambda i: (i, 0)),
    ] + [pl.BlockSpec(p.shape, lambda i: (0, 0)) for p in prepped_params]
    out_spec = pl.BlockSpec((tile_b, A), lambda i: (i, 0))

    out = pl.pallas_call(
        make_actor_kernel(num_layers),
        out_shape=jax.ShapeDtypeStruct((b_pad, A), jnp.float32),
        grid=grid,
        in_specs=in_specs,
        out_specs=out_spec,
        compiler_params=pltpu.CompilerParams(
            dimension_semantics=("parallel",),
        ),
    )(states, action_mask, *prepped_params)

    return out[:B]


# --------------------------------------------------------------------------- #
# Reference + demo
# --------------------------------------------------------------------------- #
def init_params(key, state_dim, hidden_layers, action_dim):
    dims = (state_dim,) + tuple(hidden_layers) + (action_dim,)
    params = []
    for i in range(len(dims) - 1):
        key, kw, kb = jax.random.split(key, 3)
        w = jax.random.normal(kw, (dims[i], dims[i + 1]), jnp.float32) / jnp.sqrt(
            dims[i]
        )
        b = 0.1 * jax.random.normal(kb, (dims[i + 1],), jnp.float32)
        params += [w, b]
    return params


def actor_forward_ref(states, action_mask, params):
    """Pure-JAX f32 reference for correctness checking."""
    num_layers = len(params) // 2
    h = states
    for i in range(num_layers):
        h = h @ params[2 * i] + params[2 * i + 1]
        if i < num_layers - 1:
            h = jnp.maximum(h, 0.0)
    x = jax.nn.softmax(h, axis=-1)
    s = jnp.sum(action_mask, axis=-1, keepdims=True)
    l = jnp.sum(x * (1.0 - action_mask), axis=-1, keepdims=True) / s
    x = (x + l) * action_mask
    return x / jnp.sum(x, axis=-1, keepdims=True)


if __name__ == "__main__":
    B, STATE_DIM, ACTION_DIM = 8, 32, 16
    HIDDEN_LAYERS = (64, 64)

    key = jax.random.PRNGKey(0)
    k_state, k_mask, k_params = jax.random.split(key, 3)

    states = jax.random.normal(k_state, (B, STATE_DIM), jnp.float32)
    action_mask = (jax.random.uniform(k_mask, (B, ACTION_DIM)) > 0.5).astype(
        jnp.float32
    )
    # Guarantee every row has at least one legal action (the original module
    # implicitly assumes this).
    action_mask = action_mask.at[:, 0].set(1.0)

    params = init_params(k_params, STATE_DIM, HIDDEN_LAYERS, ACTION_DIM)
    prepped = prepare_actor_params(params)

    probs = actor_forward(states, action_mask, prepped)
    jax.block_until_ready(probs)

    probs_ref = actor_forward_ref(states, action_mask, params)
    assert probs.shape == (B, ACTION_DIM)
    max_err = float(jnp.max(jnp.abs(probs - probs_ref)))
    # bf16 matmuls vs the f32 reference: loosened tolerance.
    assert max_err < 2e-2, f"mismatch vs reference: max abs err {max_err}"
    # Exact divides in the kernel -> sums are 1 to f32 rounding.
    assert jnp.allclose(jnp.sum(probs, axis=-1), 1.0, atol=1e-3)

    print("KERNEL_OK")
</pallas_src>

<mosaic_0001>
module attributes {stable_mosaic.version = 11 : i64} {
  func.func @kernel(%arg0: i32, %arg1: memref<8x32xf32, #tpu.memory_space<vmem>>, %arg2: memref<8x16xf32, #tpu.memory_space<vmem>>, %arg3: memref<32x64xbf16, #tpu.memory_space<vmem>>, %arg4: memref<1x64xf32, #tpu.memory_space<vmem>>, %arg5: memref<64x64xbf16, #tpu.memory_space<vmem>>, %arg6: memref<1x64xf32, #tpu.memory_space<vmem>>, %arg7: memref<64x16xbf16, #tpu.memory_space<vmem>>, %arg8: memref<1x16xf32, #tpu.memory_space<vmem>>, %arg9: memref<8x16xf32, #tpu.memory_space<vmem>>) attributes {dimension_semantics = [#tpu.dimension_semantics<parallel>], iteration_bounds = array<i64: 1>, scalar_prefetch = 0 : i64, scratch_operands = 0 : i64, tpu.core_type = #tpu.core_type<tc>, window_params = [{transform_indices = @transform_0, window_bounds = array<i64: 8, 32>}, {transform_indices = @transform_1, window_bounds = array<i64: 8, 16>}, {pipeline_mode = #tpu.pipeline_mode<synchronous>, transform_indices = @transform_2, window_bounds = array<i64: 32, 64>}, {pipeline_mode = #tpu.pipeline_mode<synchronous>, transform_indices = @transform_3, window_bounds = array<i64: 1, 64>}, {pipeline_mode = #tpu.pipeline_mode<synchronous>, transform_indices = @transform_4, window_bounds = array<i64: 64, 64>}, {pipeline_mode = #tpu.pipeline_mode<synchronous>, transform_indices = @transform_5, window_bounds = array<i64: 1, 64>}, {pipeline_mode = #tpu.pipeline_mode<synchronous>, transform_indices = @transform_6, window_bounds = array<i64: 64, 16>}, {pipeline_mode = #tpu.pipeline_mode<synchronous>, transform_indices = @transform_7, window_bounds = array<i64: 1, 16>}, {transform_indices = @transform_8, window_bounds = array<i64: 8, 16>}]} {
    %c0 = arith.constant 0 : index
    %c0_0 = arith.constant 0 : index
    %0 = vector.load %arg1[%c0, %c0_0] : memref<8x32xf32, #tpu.memory_space<vmem>>, vector<8x32xf32>
    %1 = arith.truncf %0 : vector<8x32xf32> to vector<8x32xbf16>
    %c0_1 = arith.constant 0 : index
    %c0_2 = arith.constant 0 : index
    %2 = vector.load %arg3[%c0_1, %c0_2] : memref<32x64xbf16, #tpu.memory_space<vmem>>, vector<32x64xbf16>
    %cst = arith.constant dense<0.000000e+00> : vector<8x64xf32>
    %3 = tpu.matmul %1, %2, %cst {dimension_numbers = #tpu.dot_dimension_numbers<[1], [0], [0], [1], [0, 0, 1, 1], [], []>} : vector<8x32xbf16>, vector<32x64xbf16>, vector<8x64xf32> -> vector<8x64xf32>
    %c0_3 = arith.constant 0 : index
    %c0_4 = arith.constant 0 : index
    %4 = vector.load %arg4[%c0_3, %c0_4] : memref<1x64xf32, #tpu.memory_space<vmem>>, vector<1x64xf32>
    %5 = vector.broadcast %4 : vector<1x64xf32> to vector<8x64xf32>
    %6 = arith.addf %3, %5 : vector<8x64xf32>
    %cst_5 = arith.constant 0.000000e+00 : f32
    %7 = vector.broadcast %cst_5 : f32 to vector<8x64xf32>
    %8 = arith.maximumf %6, %7 : vector<8x64xf32>
    %9 = arith.truncf %8 : vector<8x64xf32> to vector<8x64xbf16>
    %c0_6 = arith.constant 0 : index
    %c0_7 = arith.constant 0 : index
    %10 = vector.load %arg5[%c0_6, %c0_7] : memref<64x64xbf16, #tpu.memory_space<vmem>>, vector<64x64xbf16>
    %cst_8 = arith.constant dense<0.000000e+00> : vector<8x64xf32>
    %11 = tpu.matmul %9, %10, %cst_8 {dimension_numbers = #tpu.dot_dimension_numbers<[1], [0], [0], [1], [0, 0, 1, 1], [], []>} : vector<8x64xbf16>, vector<64x64xbf16>, vector<8x64xf32> -> vector<8x64xf32>
    %c0_9 = arith.constant 0 : index
    %c0_10 = arith.constant 0 : index
    %12 = vector.load %arg6[%c0_9, %c0_10] : memref<1x64xf32, #tpu.memory_space<vmem>>, vector<1x64xf32>
    %13 = vector.broadcast %12 : vector<1x64xf32> to vector<8x64xf32>
    %14 = arith.addf %11, %13 : vector<8x64xf32>
    %cst_11 = arith.constant 0.000000e+00 : f32
    %15 = vector.broadcast %cst_11 : f32 to vector<8x64xf32>
    %16 = arith.maximumf %14, %15 : vector<8x64xf32>
    %17 = arith.truncf %16 : vector<8x64xf32> to vector<8x64xbf16>
    %c0_12 = arith.constant 0 : index
    %c0_13 = arith.constant 0 : index
    %18 = vector.load %arg7[%c0_12, %c0_13] : memref<64x16xbf16, #tpu.memory_space<vmem>>, vector<64x16xbf16>
    %cst_14 = arith.constant dense<0.000000e+00> : vector<8x16xf32>
    %19 = tpu.matmul %17, %18, %cst_14 {dimension_numbers = #tpu.dot_dimension_numbers<[1], [0], [0], [1], [0, 0, 1, 1], [], []>} : vector<8x64xbf16>, vector<64x16xbf16>, vector<8x16xf32> -> vector<8x16xf32>
    %c0_15 = arith.constant 0 : index
    %c0_16 = arith.constant 0 : index
    %20 = vector.load %arg8[%c0_15, %c0_16] : memref<1x16xf32, #tpu.memory_space<vmem>>, vector<1x16xf32>
    %21 = vector.broadcast %20 : vector<1x16xf32> to vector<8x16xf32>
    %22 = arith.addf %19, %21 : vector<8x16xf32>
    %cst_17 = arith.constant dense<0xFF800000> : vector<8xf32>
    %23 = vector.multi_reduction <maximumf>, %22, %cst_17 [1] : vector<8x16xf32> to vector<8xf32>
    %24 = vector.shape_cast %23 : vector<8xf32> to vector<8x1xf32>
    %25 = vector.broadcast %24 : vector<8x1xf32> to vector<8x16xf32>
    %26 = arith.subf %22, %25 : vector<8x16xf32>
    %27 = math.exp %26 : vector<8x16xf32>
    %cst_18 = arith.constant dense<0.000000e+00> : vector<8xf32>
    %28 = vector.multi_reduction <add>, %27, %cst_18 [1] : vector<8x16xf32> to vector<8xf32>
    %29 = vector.shape_cast %28 : vector<8xf32> to vector<8x1xf32>
    %cst_19 = arith.constant 1.000000e+00 : f32
    %30 = vector.broadcast %cst_19 : f32 to vector<8x1xf32>
    %31 = arith.divf %30, %29 : vector<8x1xf32>
    %32 = vector.broadcast %31 : vector<8x1xf32> to vector<8x16xf32>
    %33 = arith.mulf %27, %32 : vector<8x16xf32>
    %c0_20 = arith.constant 0 : index
    %c0_21 = arith.constant 0 : index
    %34 = vector.load %arg2[%c0_20, %c0_21] : memref<8x16xf32, #tpu.memory_space<vmem>>, vector<8x16xf32>
    %cst_22 = arith.constant dense<0.000000e+00> : vector<8xf32>
    %35 = vector.multi_reduction <add>, %34, %cst_22 [1] : vector<8x16xf32> to vector<8xf32>
    %36 = vector.shape_cast %35 : vector<8xf32> to vector<8x1xf32>
    %cst_23 = arith.constant 1.000000e+00 : f32
    %37 = vector.broadcast %cst_23 : f32 to vector<8x1xf32>
    %38 = arith.divf %37, %36 : vector<8x1xf32>
    %39 = arith.mulf %33, %34 : vector<8x16xf32>
    %cst_24 = arith.constant dense<0.000000e+00> : vector<8xf32>
    %40 = vector.multi_reduction <add>, %39, %cst_24 [1] : vector<8x16xf32> to vector<8xf32>
    %41 = vector.shape_cast %40 : vector<8xf32> to vector<8x1xf32>
    %cst_25 = arith.constant 1.000000e+00 : f32
    %42 = vector.broadcast %cst_25 : f32 to vector<8x1xf32>
    %43 = arith.subf %42, %41 : vector<8x1xf32>
    %44 = arith.mulf %43, %38 : vector<8x1xf32>
    %45 = vector.broadcast %44 : vector<8x1xf32> to vector<8x16xf32>
    %46 = arith.addf %33, %45 : vector<8x16xf32>
    %47 = arith.mulf %46, %34 : vector<8x16xf32>
    %48 = arith.mulf %44, %36 : vector<8x1xf32>
    %49 = arith.addf %41, %48 : vector<8x1xf32>
    %cst_26 = arith.constant 1.000000e+00 : f32
    %50 = vector.broadcast %cst_26 : f32 to vector<8x1xf32>
    %51 = arith.divf %50, %49 : vector<8x1xf32>
    %52 = vector.broadcast %51 : vector<8x1xf32> to vector<8x16xf32>
    %53 = arith.mulf %47, %52 : vector<8x16xf32>
    %c0_27 = arith.constant 0 : index
    %c0_28 = arith.constant 0 : index
    %54 = vector.load %arg9[%c0_27, %c0_28] : memref<8x16xf32, #tpu.memory_space<vmem>>, vector<8x16xf32>
    tpu.vector_store %arg9[%c0_27, %c0_28], %53 {strides = array<i32>} : memref<8x16xf32, #tpu.memory_space<vmem>>, vector<8x16xf32>,
    return
  }
  func.func @transform_0(%arg0: i32) -> (i32, i32) {
    %c0_i32 = arith.constant 0 : i32
    %c0_i32_0 = arith.constant 0 : i32
    return %arg0, %c0_i32 : i32, i32
  }
  func.func @transform_1(%arg0: i32) -> (i32, i32) {
    %c0_i32 = arith.constant 0 : i32
    %c0_i32_0 = arith.constant 0 : i32
    return %arg0, %c0_i32 : i32, i32
  }
  func.func @transform_2(%arg0: i32) -> (i32, i32) {
    %c0_i32 = arith.constant 0 : i32
    %c0_i32_0 = arith.constant 0 : i32
    %c0_i32_1 = arith.constant 0 : i32
    return %c0_i32, %c0_i32_0 : i32, i32
  }
  func.func @transform_3(%arg0: i32) -> (i32, i32) {
    %c0_i32 = arith.constant 0 : i32
    %c0_i32_0 = arith.constant 0 : i32
    %c0_i32_1 = arith.constant 0 : i32
    return %c0_i32, %c0_i32_0 : i32, i32
  }
  func.func @transform_4(%arg0: i32) -> (i32, i32) {
    %c0_i32 = arith.constant 0 : i32
    %c0_i32_0 = arith.constant 0 : i32
    %c0_i32_1 = arith.constant 0 : i32
    return %c0_i32, %c0_i32_0 : i32, i32
  }
  func.func @transform_5(%arg0: i32) -> (i32, i32) {
    %c0_i32 = arith.constant 0 : i32
    %c0_i32_0 = arith.constant 0 : i32
    %c0_i32_1 = arith.constant 0 : i32
    return %c0_i32, %c0_i32_0 : i32, i32
  }
  func.func @transform_6(%arg0: i32) -> (i32, i32) {
    %c0_i32 = arith.constant 0 : i32
    %c0_i32_0 = arith.constant 0 : i32
    %c0_i32_1 = arith.constant 0 : i32
    return %c0_i32, %c0_i32_0 : i32, i32
  }
  func.func @transform_7(%arg0: i32) -> (i32, i32) {
    %c0_i32 = arith.constant 0 : i32
    %c0_i32_0 = arith.constant 0 : i32
    %c0_i32_1 = arith.constant 0 : i32
    return %c0_i32, %c0_i32_0 : i32, i32
  }
  func.func @transform_8(%arg0: i32) -> (i32, i32) {
    %c0_i32 = arith.constant 0 : i32
    %c0_i32_0 = arith.constant 0 : i32
    return %arg0, %c0_i32 : i32, i32
  }
}

</mosaic_0001>

<llo_original>
// kernel: actor_forward.1
$region0: #{actor_forward.1}
  #allocation0 [shape = 'u32[]', space=smem, size = 0x4, offset = 0x4, fixed_abs, tag = 'smem constant byte address 0x4 - core index']
  #allocation1 [shape = 'u32[144,128]{1,0:T(1,128)}', space=vmem, size = 0x12000, scoped, tag = 'internal scratch']
  %s0 = inlined_call_operand.hbm [shape: f32[8,32], index: 0, kind: input, shape index: {}]
  %s1 = inlined_call_operand.hbm [shape: f32[8,16], index: 1, kind: input, shape index: {}]
  %s2 = inlined_call_operand.vmem [shape: bf16[32,64], index: 2, kind: input, shape index: {}]
  %s3 = inlined_call_operand.vmem [shape: f32[1,64], index: 3, kind: input, shape index: {}]
  %s4 = inlined_call_operand.vmem [shape: bf16[64,64], index: 4, kind: input, shape index: {}]
  %s5 = inlined_call_operand.vmem [shape: f32[1,64], index: 5, kind: input, shape index: {}]
  %s6 = inlined_call_operand.vmem [shape: bf16[64,16], index: 6, kind: input, shape index: {}]
  %s7 = inlined_call_operand.vmem [shape: f32[1,16], index: 7, kind: input, shape index: {}]
  %s8 = inlined_call_operand.hbm [shape: f32[8,16], index: 8, kind: output, shape index: {}]
  %s9 = sld [smem:[#allocation0]]
  $region50: #{actor_forward.1} parent=0
    _
  %s11 = ssub.s32 1, %s9
  %s12 = scalar_select 0, %s11, %s9
  $region1: #{actor_forward.1} parent=0
    #allocation2 [shape = 'u8[4096]{0}', space=vmem, size = 0x1000, scoped, tag = 'input window, operand 0, single buffered']
    #allocation3 [shape = 's32[1]{0}', space=sflag, size = 0x4, scoped, tag = 'scoped memory for actor_forward.1']
    #allocation4 [shape = 's32[1]{0}', space=sflag, size = 0x4, scoped, tag = 'scoped memory for actor_forward.1']
    #allocation5 [shape = 'u8[4096]{0}', space=vmem, size = 0x1000, scoped, tag = 'input window, operand 1, single buffered']
    #allocation6 [shape = 's32[1]{0}', space=sflag, size = 0x4, scoped, tag = 'scoped memory for actor_forward.1']
    #allocation7 [shape = 'u8[4096]{0}', space=vmem, size = 0x1000, scoped, tag = 'output window, operand 0, single buffered']
    %13 = vsyncpa [#allocation3], 0
    %14 = vsyncpa [#allocation6], 0
    %15 = vsyncpa [#allocation4], 0
    // Predicated region
    $region2: #{actor_forward.1} parent=1 // pred_check
      _
    $region3: #{actor_forward.1} parent=1 // pred_check_branch
      %17 = sbr.rel (0) target = $region5
    $region4: #{actor_forward.1} parent=1 // pred_region
      %s19 = ssub.s32 128, 128
      %20 = vsyncadd [#allocation3], %s19
      %s22 = sshll.u32 [#allocation2], 4
      %s23 = int_to_ptr.vmem [resolvable:$true] %s22
      %25 = dma.hbm_to_vmem [thread:$0]  %s0, 128, %s23, [#allocation3]
    $region5: #{actor_forward.1} parent=1 // pred_fallthru
      _
    // Predicated region
    $region6: #{actor_forward.1} parent=1 // pred_check
      _
    $region7: #{actor_forward.1} parent=1 // pred_check_branch
      %27 = sbr.rel (0) target = $region9
    $region8: #{actor_forward.1} parent=1 // pred_region
      %s29 = ssub.s32 128, 128
      %30 = vsyncadd [#allocation6], %s29
      %s32 = sshll.u32 [#allocation5], 4
      %s33 = int_to_ptr.vmem [resolvable:$true] %s32
      %35 = dma.hbm_to_vmem [thread:$0]  %s1, 128, %s33, [#allocation6]
    $region9: #{actor_forward.1} parent=1 // pred_fallthru
      _
    // Predicated region
    $region10: #{actor_forward.1} parent=1 // pred_check
      _
    $region11: #{actor_forward.1} parent=1 // pred_check_branch
      %37 = sbr.rel (0) target = $region13
    $region12: #{actor_forward.1} parent=1 // pred_region
      _
    $region13: #{actor_forward.1} parent=1 // pred_fallthru
      _
    // Predicated region
    $region14: #{actor_forward.1} parent=1 // pred_check
      _
    $region15: #{actor_forward.1} parent=1 // pred_check_branch
      %39 = sbr.rel (0) target = $region17
    $region16: #{actor_forward.1} parent=1 // pred_region
      _
    $region17: #{actor_forward.1} parent=1 // pred_fallthru
      _
    // Predicated region
    $region18: #{actor_forward.1} parent=1 // pred_check
      _
    $region19: #{actor_forward.1} parent=1 // pred_check_branch
      %41 = sbr.rel (0) target = $region21
    $region20: #{actor_forward.1} parent=1 // pred_region
      _
    $region21: #{actor_forward.1} parent=1 // pred_fallthru
      _
    // Predicated region
    $region22: #{actor_forward.1} parent=1 // pred_check
      _
    $region23: #{actor_forward.1} parent=1 // pred_check_branch
      %43 = sbr.rel (0) target = $region25
    $region24: #{actor_forward.1} parent=1 // pred_region
      _
    $region25: #{actor_forward.1} parent=1 // pred_fallthru
      _
    // Predicated region
    $region26: #{actor_forward.1} parent=1 // pred_check
      _
    $region27: #{actor_forward.1} parent=1 // pred_check_branch
      %45 = sbr.rel (0) target = $region29
    $region28: #{actor_forward.1} parent=1 // pred_region
      _
    $region29: #{actor_forward.1} parent=1 // pred_fallthru
      _
    // Predicated region
    $region30: #{actor_forward.1} parent=1 // pred_check
      _
    $region31: #{actor_forward.1} parent=1 // pred_check_branch
      %47 = sbr.rel (0) target = $region33
    $region32: #{actor_forward.1} parent=1 // pred_region
      _
    $region33: #{actor_forward.1} parent=1 // pred_fallthru
      _
    // Predicated region
    $region34: #{actor_forward.1} parent=1 // pred_check
      _
    $region35: #{actor_forward.1} parent=1 // pred_check_branch
      %49 = sbr.rel (0) target = $region37
    $region36: #{actor_forward.1} parent=1 // pred_region
      %50 = dma.done [#allocation3], 128
    $region37: #{actor_forward.1} parent=1 // pred_fallthru
      _
    // Predicated region
    $region38: #{actor_forward.1} parent=1 // pred_check
      _
    $region39: #{actor_forward.1} parent=1 // pred_check_branch
      %52 = sbr.rel (0) target = $region41
    $region40: #{actor_forward.1} parent=1 // pred_region
      %53 = dma.done [#allocation6], 128
    $region41: #{actor_forward.1} parent=1 // pred_fallthru
      _
    %v55 = vld [vmem:[#allocation2] sm:$0xff]
    %v56 = vpack.c.bf16 %v55, %v55
    %v57 = vld [vmem:[%s2] sm:$0xf]
    %v58 = vld [vmem:[%s2 + $0x4] sm:$0xf]
    %v59 = vld [vmem:[%s2 + $0x8] sm:$0xf]
    %v60 = vld [vmem:[%s2 + $0xc] sm:$0xf]
    %v61 = vld [vmem:[%s3] sm:$0x1]
    %v63 = vlaneseq
    %v64 = vshrl.u32 %v63, 7
    %v65 = vsub.s32 0, %v64
    %v66 = vrot.slane %v61, %v65
    %v72 = vunpack.c.l.b16 %v57
    %v73 = vunpack.c.l.b16 %v58
    %v74 = vunpack.c.l.b16 %v59
    %v75 = vunpack.c.l.b16 %v60
    %v76 = vpack.c.b16 %v73, %v72
    %v77 = vpack.c.b16 %v75, %v74
    %vm80 = vcmask 261120
    %v82 = vsel %vm80, %v56, 0
    %84 = vmatprep.subr.bf16.mxu0 0
    %85 = vmatpush1.bf16.msra.mxu0 %v76
    %86 = vmatprep.subr.bf16.mxu0 0
    %87 = vmatpush1.bf16.msra.mxu0 %v77
    %88 = vmatprep.subr.bf16.mxu0 0
    %89 = vmatpush1.bf16.msra.mxu0 0
    %90 = vmatprep.subr.bf16.mxu0 0
    %91 = vmatpush1.bf16.msra.mxu0 0
    %92 = vmatprep.subr.bf16.mxu0 0
    %93 = vmatpush1.bf16.msra.mxu0 0
    %94 = vmatprep.subr.bf16.mxu0 0
    %95 = vmatpush1.bf16.msra.mxu0 0
    %96 = vmatprep.subr.bf16.mxu0 0
    %97 = vmatpush1.bf16.msra.mxu0 0
    %98 = vmatprep.subr.bf16.mxu0 0
    %99 = vmatpush1.bf16.msra.mxu0 0
    %100 = vmatprep.subr.bf16.mxu0 0
    %101 = vmatpush1.bf16.msra.mxu0 0
    %102 = vmatprep.subr.bf16.mxu0 0
    %103 = vmatpush1.bf16.msra.mxu0 0
    %104 = vmatprep.subr.bf16.mxu0 0
    %105 = vmatpush1.bf16.msra.mxu0 0
    %106 = vmatprep.subr.bf16.mxu0 0
    %107 = vmatpush1.bf16.msra.mxu0 0
    %108 = vmatprep.subr.bf16.mxu0 0
    %109 = vmatpush1.bf16.msra.mxu0 0
    %110 = vmatprep.subr.bf16.mxu0 0
    %111 = vmatpush1.bf16.msra.mxu0 0
    %112 = vmatprep.subr.bf16.mxu0 0
    %113 = vmatpush1.bf16.msra.mxu0 0
    %114 = vmatprep.subr.bf16.mxu0 0
    %115 = vmatpush1.bf16.msra.mxu0 0
    %116 = vmatprep.mubr.bf16.mxu0 0
    %117 = vmatmul.mubr.bf16.gmra.mrb[0].mxu0 %v82
    %v118 = vpop.f32.mrb[0].mxu0
    %v119 = vadd.f32 %v66, %v118
    %v120 = vpop.f32.mrb[0].mxu0
    %v121 = vpop.f32.mrb[0].mxu0
    %v122 = vpop.f32.mrb[0].mxu0
    %123 = vdwg.mxu0
    %v124 = vmax.f32 %v119, 0.0
    %v125 = vpack.c.bf16 %v124, %v124
    %v126 = vld [vmem:[%s4] sm:$0xf]
    %v127 = vld [vmem:[%s4 + $0x4] sm:$0xf]
    %v128 = vld [vmem:[%s4 + $0x8] sm:$0xf]
    %v129 = vld [vmem:[%s4 + $0xc] sm:$0xf]
    %v130 = vld [vmem:[%s4 + $0x10] sm:$0xf]
    %v131 = vld [vmem:[%s4 + $0x14] sm:$0xf]
    %v132 = vld [vmem:[%s4 + $0x18] sm:$0xf]
    %v133 = vld [vmem:[%s4 + $0x1c] sm:$0xf]
    %v134 = vld [vmem:[%s5] sm:$0x1]
    %v136 = vlaneseq
    %v137 = vshrl.u32 %v136, 7
    %v138 = vsub.s32 0, %v137
    %v139 = vrot.slane %v134, %v138
    %v149 = vunpack.c.l.b16 %v126
    %v150 = vunpack.c.l.b16 %v127
    %v151 = vunpack.c.l.b16 %v128
    %v152 = vunpack.c.l.b16 %v129
    %v153 = vunpack.c.l.b16 %v130
    %v154 = vunpack.c.l.b16 %v131
    %v155 = vunpack.c.l.b16 %v132
    %v156 = vunpack.c.l.b16 %v133
    %v157 = vpack.c.b16 %v150, %v149
    %v158 = vpack.c.b16 %v152, %v151
    %v159 = vpack.c.b16 %v154, %v153
    %v160 = vpack.c.b16 %v156, %v155
    %vm165 = vcmask 523264
    %v167 = vsel %vm165, %v125, 0
    %169 = vmatprep.subr.bf16.mxu0 0
    %170 = vmatpush1.bf16.msra.mxu0 %v157
    %171 = vmatprep.subr.bf16.mxu0 0
    %172 = vmatpush1.bf16.msra.mxu0 %v158
    %173 = vmatprep.subr.bf16.mxu0 0
    %174 = vmatpush1.bf16.msra.mxu0 %v159
    %175 = vmatprep.subr.bf16.mxu0 0
    %176 = vmatpush1.bf16.msra.mxu0 %v160
    %177 = vmatprep.subr.bf16.mxu0 0
    %178 = vmatpush1.bf16.msra.mxu0 0
    %179 = vmatprep.subr.bf16.mxu0 0
    %180 = vmatpush1.bf16.msra.mxu0 0
    %181 = vmatprep.subr.bf16.mxu0 0
    %182 = vmatpush1.bf16.msra.mxu0 0
    %183 = vmatprep.subr.bf16.mxu0 0
    %184 = vmatpush1.bf16.msra.mxu0 0
    %185 = vmatprep.subr.bf16.mxu0 0
    %186 = vmatpush1.bf16.msra.mxu0 0
    %187 = vmatprep.subr.bf16.mxu0 0
    %188 = vmatpush1.bf16.msra.mxu0 0
    %189 = vmatprep.subr.bf16.mxu0 0
    %190 = vmatpush1.bf16.msra.mxu0 0
    %191 = vmatprep.subr.bf16.mxu0 0
    %192 = vmatpush1.bf16.msra.mxu0 0
    %193 = vmatprep.subr.bf16.mxu0 0
    %194 = vmatpush1.bf16.msra.mxu0 0
    %195 = vmatprep.subr.bf16.mxu0 0
    %196 = vmatpush1.bf16.msra.mxu0 0
    %197 = vmatprep.subr.bf16.mxu0 0
    %198 = vmatpush1.bf16.msra.mxu0 0
    %199 = vmatprep.subr.bf16.mxu0 0
    %200 = vmatpush1.bf16.msra.mxu0 0
    %201 = vmatprep.mubr.bf16.mxu0 0
    %202 = vmatmul.mubr.bf16.gmra.mrb[0].mxu0 %v167
    %v203 = vpop.f32.mrb[0].mxu0
    %v204 = vadd.f32 %v139, %v203
    %v205 = vpop.f32.mrb[0].mxu0
    %v206 = vpop.f32.mrb[0].mxu0
    %v207 = vpop.f32.mrb[0].mxu0
    %208 = vdwg.mxu0
    %v209 = vmax.f32 %v204, 0.0
    %v210 = vpack.c.bf16 %v209, %v209
    %v211 = vld [vmem:[%s6] sm:$0xf]
    %v212 = vld [vmem:[%s6 + $0x4] sm:$0xf]
    %v213 = vld [vmem:[%s6 + $0x8] sm:$0xf]
    %v214 = vld [vmem:[%s6 + $0xc] sm:$0xf]
    %v215 = vld [vmem:[%s6 + $0x10] sm:$0xf]
    %v216 = vld [vmem:[%s6 + $0x14] sm:$0xf]
    %v217 = vld [vmem:[%s6 + $0x18] sm:$0xf]
    %v218 = vld [vmem:[%s6 + $0x1c] sm:$0xf]
    %v219 = vld [vmem:[%s7] sm:$0x1]
    %v221 = vlaneseq
    %v222 = vshrl.u32 %v221, 7
    %v223 = vsub.s32 0, %v222
    %v224 = vrot.slane %v219, %v223
    %v234 = vunpack.c.l.b16 %v211
    %v235 = vunpack.c.l.b16 %v212
    %v236 = vunpack.c.l.b16 %v213
    %v237 = vunpack.c.l.b16 %v214
    %v238 = vunpack.c.l.b16 %v215
    %v239 = vunpack.c.l.b16 %v216
    %v240 = vunpack.c.l.b16 %v217
    %v241 = vunpack.c.l.b16 %v218
    %v242 = vpack.c.b16 %v235, %v234
    %v243 = vpack.c.b16 %v237, %v236
    %v244 = vpack.c.b16 %v239, %v238
    %v245 = vpack.c.b16 %v241, %v240
    %v251 = vsel %vm165, %v210, 0
    %253 = vmatprep.subr.bf16.mxu0 0
    %254 = vmatpush1.bf16.msra.mxu0 %v242
    %255 = vmatprep.subr.bf16.mxu0 0
    %256 = vmatpush1.bf16.msra.mxu0 %v243
    %257 = vmatprep.subr.bf16.mxu0 0
    %258 = vmatpush1.bf16.msra.mxu0 %v244
    %259 = vmatprep.subr.bf16.mxu0 0
    %260 = vmatpush1.bf16.msra.mxu0 %v245
    %261 = vmatprep.subr.bf16.mxu0 0
    %262 = vmatpush1.bf16.msra.mxu0 0
    %263 = vmatprep.subr.bf16.mxu0 0
    %264 = vmatpush1.bf16.msra.mxu0 0
    %265 = vmatprep.subr.bf16.mxu0 0
    %266 = vmatpush1.bf16.msra.mxu0 0
    %267 = vmatprep.subr.bf16.mxu0 0
    %268 = vmatpush1.bf16.msra.mxu0 0
    %269 = vmatprep.subr.bf16.mxu0 0
    %270 = vmatpush1.bf16.msra.mxu0 0
    %271 = vmatprep.subr.bf16.mxu0 0
    %272 = vmatpush1.bf16.msra.mxu0 0
    %273 = vmatprep.subr.bf16.mxu0 0
    %274 = vmatpush1.bf16.msra.mxu0 0
    %275 = vmatprep.subr.bf16.mxu0 0
    %276 = vmatpush1.bf16.msra.mxu0 0
    %277 = vmatprep.subr.bf16.mxu0 0
    %278 = vmatpush1.bf16.msra.mxu0 0
    %279 = vmatprep.subr.bf16.mxu0 0
    %280 = vmatpush1.bf16.msra.mxu0 0
    %281 = vmatprep.subr.bf16.mxu0 0
    %282 = vmatpush1.bf16.msra.mxu0 0
    %283 = vmatprep.subr.bf16.mxu0 0
    %284 = vmatpush1.bf16.msra.mxu0 0
    %285 = vmatprep.mubr.bf16.mxu0 0
    %286 = vmatmul.mubr.bf16.gmra.mrb[0].mxu0 %v251
    %v287 = vpop.f32.mrb[0].mxu0
    %v288 = vadd.f32 %v224, %v287
    %v289 = vpop.f32.mrb[0].mxu0
    %v290 = vpop.f32.mrb[0].mxu0
    %v291 = vpop.f32.mrb[0].mxu0
    %292 = vdwg.mxu0
    %vm293 = vcmask 130048
    %v294 = vsel %vm293, %v288, -inf
    %295 = vmax.xlane.f32.xlu0 %v294
    %v296 = vpop.xlane.xlu0 %295
    %v297 = vsub.f32 %v288, %v296
    %v298 = vmul.f32 %v297, 1.442695
    %v299 = vpow.pop %v298
    %v300 = vsel %vm293, %v299, 0.0
    %301 = vadd.xlane.f32.xlu0 %v300
    %v302 = vpop.xlane.xlu0 %301
    %v303 = vrcp.pop %v302
    %v304 = vmul.f32 1.0, %v303
    %v305 = vmul.f32 %v299, %v304
    %v306 = vld [vmem:[#allocation5] sm:$0xff]
    %v307 = vsel %vm293, %v306, 0.0
    %308 = vadd.xlane.f32.xlu0 %v307
    %v309 = vpop.xlane.xlu0 %308
    %v310 = vrcp.pop %v309
    %v311 = vmul.f32 1.0, %v310
    %v312 = vmul.f32 %v305, %v306
    %v313 = vsel %vm293, %v312, 0.0
    %314 = vadd.xlane.f32.xlu0 %v313
    %v315 = vpop.xlane.xlu0 %314
    %v316 = vsub.f32 1.0, %v315
    %v317 = vmul.f32 %v316, %v311
    %v318 = vadd.f32 %v305, %v317
    %v319 = vmul.f32 %v318, %v306
    %v320 = vmul.f32 %v317, %v309
    %v321 = vadd.f32 %v315, %v320
    %v322 = vrcp.pop %v321
    %v323 = vmul.f32 1.0, %v322
    %v324 = vmul.f32 %v319, %v323
    %325 = vst.msk [vmem:[#allocation7] sm:$0xff] %vm293, %v324
    // Predicated region
    $region42: #{actor_forward.1} parent=1 // pred_check
      _
    $region43: #{actor_forward.1} parent=1 // pred_check_branch
      %327 = sbr.rel (0) target = $region45
    $region44: #{actor_forward.1} parent=1 // pred_region
      %s329 = ssub.s32 128, 128
      %330 = vsyncadd [#allocation4], %s329
      %s332 = sshll.u32 [#allocation7], 4
      %s333 = int_to_ptr.vmem [resolvable:$true] %s332
      %335 = dma.vmem_to_hbm [thread:$0]  %s333, 128, %s8, [#allocation4]
    $region45: #{actor_forward.1} parent=1 // pred_fallthru
      _
    // Predicated region
    $region46: #{actor_forward.1} parent=1 // pred_check
      _
    $region47: #{actor_forward.1} parent=1 // pred_check_branch
      %337 = sbr.rel (0) target = $region49
    $region48: #{actor_forward.1} parent=1 // pred_region
      %338 = dma.done [#allocation4], 128
    $region49: #{actor_forward.1} parent=1 // pred_fallthru
      _
    %339 = vsyncpa [#allocation3], 1
    %340 = vsyncpa [#allocation6], 1
    %341 = vsyncpa [#allocation4], 1

</llo_original>
